<compile_context>
chip_gen: v6e
topology: v6e:2x2x1
jax: 0.10.0
libtpu: 0.0.40
codegen_flags: <defaults>
</compile_context>

<pallas_src>
import functools

import jax
import jax.numpy as jnp
from jax.experimental import pallas as pl
from jax.experimental.pallas import tpu as pltpu


def _round_up(x, m):
    return (x + m - 1) // m * m


def _conv_gemm_kernel(x_ref, w_ref, b_ref, o_ref, *, apply_relu):
    """One grid step = one M-tile: out = relu?(x_tile @ w + b)."""
    acc = jnp.dot(x_ref[...], w_ref[...], preferred_element_type=jnp.float32)
    acc = acc + b_ref[...]          # (TILE_M, Cout_pad) + (1, Cout_pad)
    if apply_relu:
        acc = jnp.maximum(acc, 0.0)
    o_ref[...] = acc.astype(o_ref.dtype)


def conv2d_k4s2p1(x_nhwc, w_oihw, b, *, apply_relu, out_dtype=jnp.float32,
                  tile_m=512):
    """Conv2d(kernel=4, stride=2, padding=1) + optional fused ReLU.

    x_nhwc : (N, H, W, Cin)  float32 or bfloat16
    w_oihw : (Cout, Cin, 4, 4)  (PyTorch weight layout)
    b      : (Cout,)
    returns: (N, OH, OW, Cout) in `out_dtype`, OH = H//2, OW = W//2
    """
    N, H, W, Cin = x_nhwc.shape
    assert H % 2 == 0 and W % 2 == 0, "k=4,s=2,p=1 path assumes even H and W"
    Cout = w_oihw.shape[0]
    KH = KW = 4
    OH, OW = H // 2, W // 2
    M = N * OH * OW

    K = KH * KW * Cin                        # taps folded into contraction dim
    K_pad = _round_up(K, 128)                # fill MXU depth (128-deep passes)
    Cout_pad = _round_up(Cout, 128)          # lane-dense accumulator / stores
    TILE_M = min(tile_m, _round_up(M, 16))   # multiple of 16 (bf16 sublane pack)
    M_pad = _round_up(M, TILE_M)

    # ---- glue (plain JAX): pad + im2col, taps folded into the K/lane dim ----
    x_pad = jnp.pad(x_nhwc, ((0, 0), (1, 1), (1, 1), (0, 0)))
    taps = []
    for kh in range(KH):
        for kw in range(KW):
            taps.append(x_pad[:, kh:kh + 2 * OH:2, kw:kw + 2 * OW:2, :])
    x_col = jnp.concatenate(taps, axis=-1).reshape(M, K)        # (M, 16*Cin)
    x_col = x_col.astype(jnp.bfloat16)                          # MXU input dtype
    x_col = jnp.pad(x_col, ((0, M_pad - M), (0, K_pad - K)))

    # (Cout, Cin, KH, KW) -> (KH, KW, Cin, Cout) -> (16*Cin, Cout); K ordering
    # matches the im2col slab: row = (kh*KW + kw)*Cin + cin.
    w_mat = jnp.transpose(w_oihw, (2, 3, 1, 0)).reshape(K, Cout)
    w_mat = jnp.pad(w_mat.astype(jnp.bfloat16),
                    ((0, K_pad - K), (0, Cout_pad - Cout)))
    b_row = jnp.pad(b.astype(jnp.float32), (0, Cout_pad - Cout))
    b_row = b_row.reshape(1, Cout_pad)

    kernel = functools.partial(_conv_gemm_kernel, apply_relu=apply_relu)
    out = pl.pallas_call(
        kernel,
        out_shape=jax.ShapeDtypeStruct((M_pad, Cout_pad), out_dtype),
        grid_spec=pltpu.PrefetchScalarGridSpec(
            num_scalar_prefetch=0,
            grid=(M_pad // TILE_M,),
            in_specs=[
                # activation tile: pipelined over the M grid axis
                pl.BlockSpec((TILE_M, K_pad), lambda i: (i, 0)),
                # full weight: constant index_map -> one DMA, VMEM-resident
                pl.BlockSpec((K_pad, Cout_pad), lambda i: (0, 0)),
                # bias row: constant index_map
                pl.BlockSpec((1, Cout_pad), lambda i: (0, 0)),
            ],
            out_specs=pl.BlockSpec((TILE_M, Cout_pad), lambda i: (i, 0)),
        ),
        compiler_params=pltpu.CompilerParams(
            # Independent M tiles: megacore-shardable (v7x's two TCs each take
            # half the row tiles); no reduction grid axis remains.
            dimension_semantics=("parallel",),
        ),
    )(x_col, w_mat, b_row)

    return out[:M, :Cout].reshape(N, OH, OW, Cout)


def init_encoder_params(key, in_channels, hidden_channels, embedding_dim):
    """Deterministic synthetic parameters (PyTorch Conv2d weight layout)."""
    k1, k2, k3, k4 = jax.random.split(key, 4)
    s1 = 1.0 / jnp.sqrt(in_channels * 4 * 4)
    s2 = 1.0 / jnp.sqrt(hidden_channels * 4 * 4)
    return {
        "conv1_w": jax.random.uniform(
            k1, (hidden_channels, in_channels, 4, 4), jnp.float32, -s1, s1),
        "conv1_b": jax.random.uniform(
            k2, (hidden_channels,), jnp.float32, -s1, s1),
        "conv2_w": jax.random.uniform(
            k3, (embedding_dim, hidden_channels, 4, 4), jnp.float32, -s2, s2),
        "conv2_b": jax.random.uniform(
            k4, (embedding_dim,), jnp.float32, -s2, s2),
    }


def encoder_forward(params, x_nchw):
    """Encoder.forward: relu(conv1(x)); conv2(x).  In/out are NCHW like PyTorch."""
    x = jnp.transpose(x_nchw, (0, 2, 3, 1))                       # NCHW -> NHWC
    # Intermediate written in bf16: it only feeds conv2's bf16 GEMM, so this
    # halves the intermediate HBM traffic with no extra precision loss.
    h = conv2d_k4s2p1(x, params["conv1_w"], params["conv1_b"],
                      apply_relu=True, out_dtype=jnp.bfloat16)
    z = conv2d_k4s2p1(h, params["conv2_w"], params["conv2_b"],
                      apply_relu=False, out_dtype=jnp.float32)
    return jnp.transpose(z, (0, 3, 1, 2))                         # NHWC -> NCHW


def _reference_forward(params, x_nchw):
    """Pure-JAX f32 reference (lax conv) for correctness checking."""
    def conv(x, w, b):
        y = jax.lax.conv_general_dilated(
            x, w, window_strides=(2, 2), padding=((1, 1), (1, 1)),
            dimension_numbers=("NCHW", "OIHW", "NCHW"))
        return y + b[None, :, None, None]
    h = jax.nn.relu(conv(x_nchw, params["conv1_w"], params["conv1_b"]))
    return conv(h, params["conv2_w"], params["conv2_b"])


if __name__ == "__main__":
    # Small shapes consistent with the module: batch=2, in_channels=4,
    # spatial=16x16, hidden_channels=32, embedding_dim=16.
    key = jax.random.PRNGKey(0)
    kx, kp = jax.random.split(key)

    in_channels, hidden_channels, embedding_dim = 4, 32, 16
    x = jax.random.normal(kx, (2, in_channels, 16, 16), jnp.float32)   # NCHW
    params = init_encoder_params(kp, in_channels, hidden_channels, embedding_dim)

    out = jax.jit(encoder_forward)(params, x)
    out = jax.block_until_ready(out)

    assert out.shape == (2, embedding_dim, 4, 4), out.shape

    ref = _reference_forward(params, x)
    err = float(jnp.max(jnp.abs(out - ref)))
    scale = float(jnp.max(jnp.abs(ref)))
    # bf16 matmul inputs + bf16 intermediate (f32 accumulation) -> loosened
    # tolerance vs the pure-f32 reference.
    assert err <= 3e-2 + 3e-2 * scale, (err, scale)

    print("KERNEL_OK")
</pallas_src>

<mosaic_0001>
module attributes {stable_mosaic.version = 11 : i64} {
  func.func @_conv_gemm_kernel(%arg0: i32, %arg1: memref<128x128xbf16, #tpu.memory_space<vmem>>, %arg2: memref<128x128xbf16, #tpu.memory_space<vmem>>, %arg3: memref<1x128xf32, #tpu.memory_space<vmem>>, %arg4: memref<128x128xbf16, #tpu.memory_space<vmem>>) attributes {dimension_semantics = [#tpu.dimension_semantics<parallel>], iteration_bounds = array<i64: 1>, scalar_prefetch = 0 : i64, scratch_operands = 0 : i64, tpu.core_type = #tpu.core_type<tc>, window_params = [{transform_indices = @transform_0, window_bounds = array<i64: 128, 128>}, {pipeline_mode = #tpu.pipeline_mode<synchronous>, transform_indices = @transform_1, window_bounds = array<i64: 128, 128>}, {pipeline_mode = #tpu.pipeline_mode<synchronous>, transform_indices = @transform_2, window_bounds = array<i64: 1, 128>}, {transform_indices = @transform_3, window_bounds = array<i64: 128, 128>}]} {
    %c0 = arith.constant 0 : index
    %c0_0 = arith.constant 0 : index
    %0 = vector.load %arg1[%c0, %c0_0] : memref<128x128xbf16, #tpu.memory_space<vmem>>, vector<128x128xbf16>
    %c0_1 = arith.constant 0 : index
    %c0_2 = arith.constant 0 : index
    %1 = vector.load %arg2[%c0_1, %c0_2] : memref<128x128xbf16, #tpu.memory_space<vmem>>, vector<128x128xbf16>
    %cst = arith.constant dense<0.000000e+00> : vector<128x128xf32>
    %2 = tpu.matmul %0, %1, %cst {dimension_numbers = #tpu.dot_dimension_numbers<[1], [0], [0], [1], [0, 0, 1, 1], [], []>} : vector<128x128xbf16>, vector<128x128xbf16>, vector<128x128xf32> -> vector<128x128xf32>
    %c0_3 = arith.constant 0 : index
    %c0_4 = arith.constant 0 : index
    %3 = vector.load %arg3[%c0_3, %c0_4] : memref<1x128xf32, #tpu.memory_space<vmem>>, vector<1x128xf32>
    %4 = vector.broadcast %3 : vector<1x128xf32> to vector<128x128xf32>
    %5 = arith.addf %2, %4 : vector<128x128xf32>
    %cst_5 = arith.constant 0.000000e+00 : f32
    %6 = vector.broadcast %cst_5 : f32 to vector<128x128xf32>
    %7 = arith.maximumf %5, %6 : vector<128x128xf32>
    %8 = arith.truncf %7 : vector<128x128xf32> to vector<128x128xbf16>
    %c0_6 = arith.constant 0 : index
    %c0_7 = arith.constant 0 : index
    %9 = vector.load %arg4[%c0_6, %c0_7] : memref<128x128xbf16, #tpu.memory_space<vmem>>, vector<128x128xbf16>
    tpu.vector_store %arg4[%c0_6, %c0_7], %8 {strides = array<i32>} : memref<128x128xbf16, #tpu.memory_space<vmem>>, vector<128x128xbf16>,
    return
  }
  func.func @transform_0(%arg0: i32) -> (i32, i32) {
    %c0_i32 = arith.constant 0 : i32
    %c0_i32_0 = arith.constant 0 : i32
    return %arg0, %c0_i32 : i32, i32
  }
  func.func @transform_1(%arg0: i32) -> (i32, i32) {
    %c0_i32 = arith.constant 0 : i32
    %c0_i32_0 = arith.constant 0 : i32
    %c0_i32_1 = arith.constant 0 : i32
    return %c0_i32, %c0_i32_0 : i32, i32
  }
  func.func @transform_2(%arg0: i32) -> (i32, i32) {
    %c0_i32 = arith.constant 0 : i32
    %c0_i32_0 = arith.constant 0 : i32
    %c0_i32_1 = arith.constant 0 : i32
    return %c0_i32, %c0_i32_0 : i32, i32
  }
  func.func @transform_3(%arg0: i32) -> (i32, i32) {
    %c0_i32 = arith.constant 0 : i32
    %c0_i32_0 = arith.constant 0 : i32
    return %arg0, %c0_i32 : i32, i32
  }
}

module attributes {stable_mosaic.version = 11 : i64} {
  func.func @_conv_gemm_kernel(%arg0: i32, %arg1: memref<32x512xbf16, #tpu.memory_space<vmem>>, %arg2: memref<512x128xbf16, #tpu.memory_space<vmem>>, %arg3: memref<1x128xf32, #tpu.memory_space<vmem>>, %arg4: memref<32x128xf32, #tpu.memory_space<vmem>>) attributes {dimension_semantics = [#tpu.dimension_semantics<parallel>], iteration_bounds = array<i64: 1>, scalar_prefetch = 0 : i64, scratch_operands = 0 : i64, tpu.core_type = #tpu.core_type<tc>, window_params = [{transform_indices = @transform_0, window_bounds = array<i64: 32, 512>}, {pipeline_mode = #tpu.pipeline_mode<synchronous>, transform_indices = @transform_1, window_bounds = array<i64: 512, 128>}, {pipeline_mode = #tpu.pipeline_mode<synchronous>, transform_indices = @transform_2, window_bounds = array<i64: 1, 128>}, {transform_indices = @transform_3, window_bounds = array<i64: 32, 128>}]} {
    %c0 = arith.constant 0 : index
    %c0_0 = arith.constant 0 : index
    %0 = vector.load %arg1[%c0, %c0_0] : memref<32x512xbf16, #tpu.memory_space<vmem>>, vector<32x512xbf16>
    %c0_1 = arith.constant 0 : index
    %c0_2 = arith.constant 0 : index
    %1 = vector.load %arg2[%c0_1, %c0_2] : memref<512x128xbf16, #tpu.memory_space<vmem>>, vector<512x128xbf16>
    %cst = arith.constant dense<0.000000e+00> : vector<32x128xf32>
    %2 = tpu.matmul %0, %1, %cst {dimension_numbers = #tpu.dot_dimension_numbers<[1], [0], [0], [1], [0, 0, 1, 1], [], []>} : vector<32x512xbf16>, vector<512x128xbf16>, vector<32x128xf32> -> vector<32x128xf32>
    %c0_3 = arith.constant 0 : index
    %c0_4 = arith.constant 0 : index
    %3 = vector.load %arg3[%c0_3, %c0_4] : memref<1x128xf32, #tpu.memory_space<vmem>>, vector<1x128xf32>
    %4 = vector.broadcast %3 : vector<1x128xf32> to vector<32x128xf32>
    %5 = arith.addf %2, %4 : vector<32x128xf32>
    %c0_5 = arith.constant 0 : index
    %c0_6 = arith.constant 0 : index
    %6 = vector.load %arg4[%c0_5, %c0_6] : memref<32x128xf32, #tpu.memory_space<vmem>>, vector<32x128xf32>
    tpu.vector_store %arg4[%c0_5, %c0_6], %5 {strides = array<i32>} : memref<32x128xf32, #tpu.memory_space<vmem>>, vector<32x128xf32>,
    return
  }
  func.func @transform_0(%arg0: i32) -> (i32, i32) {
    %c0_i32 = arith.constant 0 : i32
    %c0_i32_0 = arith.constant 0 : i32
    return %arg0, %c0_i32 : i32, i32
  }
  func.func @transform_1(%arg0: i32) -> (i32, i32) {
    %c0_i32 = arith.constant 0 : i32
    %c0_i32_0 = arith.constant 0 : i32
    %c0_i32_1 = arith.constant 0 : i32
    return %c0_i32, %c0_i32_0 : i32, i32
  }
  func.func @transform_2(%arg0: i32) -> (i32, i32) {
    %c0_i32 = arith.constant 0 : i32
    %c0_i32_0 = arith.constant 0 : i32
    %c0_i32_1 = arith.constant 0 : i32
    return %c0_i32, %c0_i32_0 : i32, i32
  }
  func.func @transform_3(%arg0: i32) -> (i32, i32) {
    %c0_i32 = arith.constant 0 : i32
    %c0_i32_0 = arith.constant 0 : i32
    return %arg0, %c0_i32 : i32, i32
  }
}

</mosaic_0001>

<llo_original>
// kernel: encoder_forward.2
$region0: #{encoder_forward.2}
  #allocation0 [shape = 'u32[]', space=smem, size = 0x4, offset = 0x4, fixed_abs, tag = 'smem constant byte address 0x4 - core index']
  #allocation1 [shape = 'u32[144,128]{1,0:T(1,128)}', space=vmem, size = 0x12000, scoped, tag = 'internal scratch']
  %s0 = inlined_call_operand.vmem [shape: bf16[128,128], index: 0, kind: input, shape index: {}]
  %s1 = inlined_call_operand.vmem [shape: bf16[128,128], index: 1, kind: input, shape index: {}]
  %s2 = inlined_call_operand.vmem [shape: f32[1,128], index: 2, kind: input, shape index: {}]
  %s3 = inlined_call_operand.vmem [shape: bf16[128,128], index: 3, kind: output, shape index: {}]
  %s4 = sld [smem:[#allocation0]]
  $region22: #{encoder_forward.2} parent=0
    _
  %s6 = ssub.s32 1, %s4
  %s7 = scalar_select 0, %s6, %s4
  // Predicated region
  $region2: #{encoder_forward.2} parent=0 // pred_check
    _
  $region3: #{encoder_forward.2} parent=0 // pred_check_branch
    %9 = sbr.rel (0) target = $region5
  $region4: #{encoder_forward.2} parent=0 // pred_region
    _
  $region5: #{encoder_forward.2} parent=0 // pred_fallthru
    _
  // Predicated region
  $region6: #{encoder_forward.2} parent=0 // pred_check
    _
  $region7: #{encoder_forward.2} parent=0 // pred_check_branch
    %11 = sbr.rel (0) target = $region9
  $region8: #{encoder_forward.2} parent=0 // pred_region
    _
  $region9: #{encoder_forward.2} parent=0 // pred_fallthru
    _
  // Predicated region
  $region10: #{encoder_forward.2} parent=0 // pred_check
    _
  $region11: #{encoder_forward.2} parent=0 // pred_check_branch
    %13 = sbr.rel (0) target = $region13
  $region12: #{encoder_forward.2} parent=0 // pred_region
    _
  $region13: #{encoder_forward.2} parent=0 // pred_fallthru
    _
  %v15 = vld [vmem:[%s0] sm:$0xf]
  %v16 = vld [vmem:[%s0 + $0x4] sm:$0xf]
  %v17 = vld [vmem:[%s0 + $0x8] sm:$0xf]
  %v18 = vld [vmem:[%s0 + $0xc] sm:$0xf]
  %v19 = vld [vmem:[%s0 + $0x10] sm:$0xf]
  %v20 = vld [vmem:[%s0 + $0x14] sm:$0xf]
  %v21 = vld [vmem:[%s0 + $0x18] sm:$0xf]
  %v22 = vld [vmem:[%s0 + $0x1c] sm:$0xf]
  %v23 = vld [vmem:[%s0 + $0x20] sm:$0xf]
  %v24 = vld [vmem:[%s0 + $0x24] sm:$0xf]
  %v25 = vld [vmem:[%s0 + $0x28] sm:$0xf]
  %v26 = vld [vmem:[%s0 + $0x2c] sm:$0xf]
  %v27 = vld [vmem:[%s0 + $0x30] sm:$0xf]
  %v28 = vld [vmem:[%s0 + $0x34] sm:$0xf]
  %v29 = vld [vmem:[%s0 + $0x38] sm:$0xf]
  %v30 = vld [vmem:[%s0 + $0x3c] sm:$0xf]
  %v31 = vld [vmem:[%s1] sm:$0xf]
  %v32 = vld [vmem:[%s1 + $0x4] sm:$0xf]
  %v33 = vld [vmem:[%s1 + $0x8] sm:$0xf]
  %v34 = vld [vmem:[%s1 + $0xc] sm:$0xf]
  %v35 = vld [vmem:[%s1 + $0x10] sm:$0xf]
  %v36 = vld [vmem:[%s1 + $0x14] sm:$0xf]
  %v37 = vld [vmem:[%s1 + $0x18] sm:$0xf]
  %v38 = vld [vmem:[%s1 + $0x1c] sm:$0xf]
  %v39 = vld [vmem:[%s1 + $0x20] sm:$0xf]
  %v40 = vld [vmem:[%s1 + $0x24] sm:$0xf]
  %v41 = vld [vmem:[%s1 + $0x28] sm:$0xf]
  %v42 = vld [vmem:[%s1 + $0x2c] sm:$0xf]
  %v43 = vld [vmem:[%s1 + $0x30] sm:$0xf]
  %v44 = vld [vmem:[%s1 + $0x34] sm:$0xf]
  %v45 = vld [vmem:[%s1 + $0x38] sm:$0xf]
  %v46 = vld [vmem:[%s1 + $0x3c] sm:$0xf]
  %v47 = vld [vmem:[%s2] sm:$0x1]
  %v49 = vlaneseq
  %v50 = vshrl.u32 %v49, 7
  %v51 = vsub.s32 0, %v50
  %v52 = vrot.slane %v47, %v51
  %v70 = vunpack.c.l.b16 %v15
  %v71 = vunpack.c.l.b16 %v16
  %v72 = vunpack.c.l.b16 %v17
  %v73 = vunpack.c.l.b16 %v18
  %v74 = vunpack.c.l.b16 %v19
  %v75 = vunpack.c.l.b16 %v20
  %v76 = vunpack.c.l.b16 %v21
  %v77 = vunpack.c.l.b16 %v22
  %v78 = vunpack.c.l.b16 %v23
  %v79 = vunpack.c.l.b16 %v24
  %v80 = vunpack.c.l.b16 %v25
  %v81 = vunpack.c.l.b16 %v26
  %v82 = vunpack.c.l.b16 %v27
  %v83 = vunpack.c.l.b16 %v28
  %v84 = vunpack.c.l.b16 %v29
  %v85 = vunpack.c.l.b16 %v30
  %v86 = vpack.c.b16 %v71, %v70
  %v87 = vpack.c.b16 %v73, %v72
  %v88 = vpack.c.b16 %v75, %v74
  %v89 = vpack.c.b16 %v77, %v76
  %v90 = vpack.c.b16 %v79, %v78
  %v91 = vpack.c.b16 %v81, %v80
  %v92 = vpack.c.b16 %v83, %v82
  %v93 = vpack.c.b16 %v85, %v84
  %v118 = vunpack.c.l.b16 %v31
  %v119 = vunpack.c.l.b16 %v32
  %v120 = vunpack.c.l.b16 %v33
  %v121 = vunpack.c.l.b16 %v34
  %v122 = vunpack.c.l.b16 %v35
  %v123 = vunpack.c.l.b16 %v36
  %v124 = vunpack.c.l.b16 %v37
  %v125 = vunpack.c.l.b16 %v38
  %v126 = vunpack.c.l.b16 %v39
  %v127 = vunpack.c.l.b16 %v40
  %v128 = vunpack.c.l.b16 %v41
  %v129 = vunpack.c.l.b16 %v42
  %v130 = vunpack.c.l.b16 %v43
  %v131 = vunpack.c.l.b16 %v44
  %v132 = vunpack.c.l.b16 %v45
  %v133 = vunpack.c.l.b16 %v46
  %v134 = vpack.c.b16 %v119, %v118
  %v135 = vpack.c.b16 %v121, %v120
  %v136 = vpack.c.b16 %v123, %v122
  %v137 = vpack.c.b16 %v125, %v124
  %v138 = vpack.c.b16 %v127, %v126
  %v139 = vpack.c.b16 %v129, %v128
  %v140 = vpack.c.b16 %v131, %v130
  %v141 = vpack.c.b16 %v133, %v132
  %150 = vmatprep.subr.bf16.mxu0 0
  %151 = vmatpush1.bf16.msra.mxu0 %v141
  %152 = vmatprep.subr.bf16.mxu0 0
  %153 = vmatpush1.bf16.msra.mxu0 %v140
  %154 = vmatprep.subr.bf16.mxu0 0
  %155 = vmatpush1.bf16.msra.mxu0 %v139
  %156 = vmatprep.subr.bf16.mxu0 0
  %157 = vmatpush1.bf16.msra.mxu0 %v138
  %158 = vmatprep.subr.bf16.mxu0 0
  %159 = vmatpush1.bf16.msra.mxu0 %v137
  %160 = vmatprep.subr.bf16.mxu0 0
  %161 = vmatpush1.bf16.msra.mxu0 %v136
  %162 = vmatprep.subr.bf16.mxu0 0
  %163 = vmatpush1.bf16.msra.mxu0 %v135
  %164 = vmatprep.subr.bf16.mxu0 0
  %165 = vmatpush1.bf16.msra.mxu0 %v134
  %166 = vmatprep.subr.bf16.mxu0 0
  %167 = vmatpush2.bf16.msra.mxu0 0
  %168 = vmatprep.subr.bf16.mxu0 0
  %169 = vmatpush2.bf16.msra.mxu0 0
  %170 = vmatprep.subr.bf16.mxu0 0
  %171 = vmatpush2.bf16.msra.mxu0 0
  %172 = vmatprep.subr.bf16.mxu0 0
  %173 = vmatpush2.bf16.msra.mxu0 0
  %174 = vmatprep.subr.bf16.mxu0 0
  %175 = vmatpush2.bf16.msra.mxu0 0
  %176 = vmatprep.subr.bf16.mxu0 0
  %177 = vmatpush2.bf16.msra.mxu0 0
  %178 = vmatprep.subr.bf16.mxu0 0
  %179 = vmatpush2.bf16.msra.mxu0 0
  %180 = vmatprep.subr.bf16.mxu0 0
  %181 = vmatpush2.bf16.msra.mxu0 0
  %182 = vmatprep.mubr.bf16.mxu0 0
  %183 = vmatmul.mubr.bf16.gmra.mxu0 %v86
  %v184 = vpop.f32.mrf.mxu0
  %v185 = vadd.f32 %v52, %v184
  %v186 = vpop.f32.mrf.mxu0
  %v187 = vpop.f32.mrf.mxu0
  %v188 = vadd.f32 %v52, %v187
  %v189 = vpop.f32.mrf.mxu0
  %190 = vmatprep.mubr.bf16.mxu0 0
  %191 = vmatmul.mubr.bf16.gmra.mxu0 %v87
  %v192 = vpop.f32.mrf.mxu0
  %v193 = vadd.f32 %v52, %v192
  %v194 = vpop.f32.mrf.mxu0
  %v195 = vpop.f32.mrf.mxu0
  %v196 = vadd.f32 %v52, %v195
  %v197 = vpop.f32.mrf.mxu0
  %198 = vmatprep.mubr.bf16.mxu0 0
  %199 = vmatmul.mubr.bf16.gmra.mxu0 %v88
  %v200 = vpop.f32.mrf.mxu0
  %v201 = vadd.f32 %v52, %v200
  %v202 = vpop.f32.mrf.mxu0
  %v203 = vpop.f32.mrf.mxu0
  %v204 = vadd.f32 %v52, %v203
  %v205 = vpop.f32.mrf.mxu0
  %206 = vmatprep.mubr.bf16.mxu0 0
  %207 = vmatmul.mubr.bf16.gmra.mxu0 %v89
  %v208 = vpop.f32.mrf.mxu0
  %v209 = vadd.f32 %v52, %v208
  %v210 = vpop.f32.mrf.mxu0
  %v211 = vpop.f32.mrf.mxu0
  %v212 = vadd.f32 %v52, %v211
  %v213 = vpop.f32.mrf.mxu0
  %214 = vmatprep.mubr.bf16.mxu0 0
  %215 = vmatmul.mubr.bf16.gmra.mxu0 %v90
  %v216 = vpop.f32.mrf.mxu0
  %v217 = vadd.f32 %v52, %v216
  %v218 = vpop.f32.mrf.mxu0
  %v219 = vpop.f32.mrf.mxu0
  %v220 = vadd.f32 %v52, %v219
  %v221 = vpop.f32.mrf.mxu0
  %222 = vmatprep.mubr.bf16.mxu0 0
  %223 = vmatmul.mubr.bf16.gmra.mxu0 %v91
  %v224 = vpop.f32.mrf.mxu0
  %v225 = vadd.f32 %v52, %v224
  %v226 = vpop.f32.mrf.mxu0
  %v227 = vpop.f32.mrf.mxu0
  %v228 = vadd.f32 %v52, %v227
  %v229 = vpop.f32.mrf.mxu0
  %230 = vmatprep.mubr.bf16.mxu0 0
  %231 = vmatmul.mubr.bf16.gmra.mxu0 %v92
  %v232 = vpop.f32.mrf.mxu0
  %v233 = vadd.f32 %v52, %v232
  %v234 = vpop.f32.mrf.mxu0
  %v235 = vpop.f32.mrf.mxu0
  %v236 = vadd.f32 %v52, %v235
  %v237 = vpop.f32.mrf.mxu0
  %238 = vmatprep.mubr.bf16.mxu0 0
  %239 = vmatmul.mubr.bf16.gmra.mxu0 %v93
  %v240 = vpop.f32.mrf.mxu0
  %v241 = vadd.f32 %v52, %v240
  %v242 = vpop.f32.mrf.mxu0
  %v243 = vpop.f32.mrf.mxu0
  %v244 = vadd.f32 %v52, %v243
  %v245 = vpop.f32.mrf.mxu0
  %246 = vdwg.mxu0
  %v247 = vmax.f32 %v185, 0.0
  %v248 = vmax.f32 %v188, 0.0
  %v249 = vmax.f32 %v193, 0.0
  %v250 = vmax.f32 %v196, 0.0
  %v251 = vmax.f32 %v201, 0.0
  %v252 = vmax.f32 %v204, 0.0
  %v253 = vmax.f32 %v209, 0.0
  %v254 = vmax.f32 %v212, 0.0
  %v255 = vmax.f32 %v217, 0.0
  %v256 = vmax.f32 %v220, 0.0
  %v257 = vmax.f32 %v225, 0.0
  %v258 = vmax.f32 %v228, 0.0
  %v259 = vmax.f32 %v233, 0.0
  %v260 = vmax.f32 %v236, 0.0
  %v261 = vmax.f32 %v241, 0.0
  %v262 = vmax.f32 %v244, 0.0
  %v263 = vpack.c.bf16 %v248, %v247
  %v264 = vpack.c.bf16 %v250, %v249
  %v265 = vpack.c.bf16 %v252, %v251
  %v266 = vpack.c.bf16 %v254, %v253
  %v267 = vpack.c.bf16 %v256, %v255
  %v268 = vpack.c.bf16 %v258, %v257
  %v269 = vpack.c.bf16 %v260, %v259
  %v270 = vpack.c.bf16 %v262, %v261
  %v279 = vunpack.c.l.b16 %v263
  %v280 = vunpack.c.h.b16 %v263
  %v281 = vunpack.c.l.b16 %v264
  %v282 = vunpack.c.h.b16 %v264
  %v283 = vunpack.c.l.b16 %v265
  %v284 = vunpack.c.h.b16 %v265
  %v285 = vunpack.c.l.b16 %v266
  %v286 = vunpack.c.h.b16 %v266
  %v287 = vunpack.c.l.b16 %v267
  %v288 = vunpack.c.h.b16 %v267
  %v289 = vunpack.c.l.b16 %v268
  %v290 = vunpack.c.h.b16 %v268
  %v291 = vunpack.c.l.b16 %v269
  %v292 = vunpack.c.h.b16 %v269
  %v293 = vunpack.c.l.b16 %v270
  %v294 = vunpack.c.h.b16 %v270
  %v295 = vpack.c.b16 %v279, %v279
  %v296 = vpack.c.b16 %v280, %v280
  %v297 = vpack.c.b16 %v281, %v281
  %v298 = vpack.c.b16 %v282, %v282
  %v299 = vpack.c.b16 %v283, %v283
  %v300 = vpack.c.b16 %v284, %v284
  %v301 = vpack.c.b16 %v285, %v285
  %v302 = vpack.c.b16 %v286, %v286
  %v303 = vpack.c.b16 %v287, %v287
  %v304 = vpack.c.b16 %v288, %v288
  %v305 = vpack.c.b16 %v289, %v289
  %v306 = vpack.c.b16 %v290, %v290
  %v307 = vpack.c.b16 %v291, %v291
  %v308 = vpack.c.b16 %v292, %v292
  %v309 = vpack.c.b16 %v293, %v293
  %v310 = vpack.c.b16 %v294, %v294
  %327 = vst [vmem:[%s3] sm:$0xf] %v295
  %328 = vst [vmem:[%s3 + $0x4] sm:$0xf] %v296
  %329 = vst [vmem:[%s3 + $0x8] sm:$0xf] %v297
  %330 = vst [vmem:[%s3 + $0xc] sm:$0xf] %v298
  %331 = vst [vmem:[%s3 + $0x10] sm:$0xf] %v299
  %332 = vst [vmem:[%s3 + $0x14] sm:$0xf] %v300
  %333 = vst [vmem:[%s3 + $0x18] sm:$0xf] %v301
  %334 = vst [vmem:[%s3 + $0x1c] sm:$0xf] %v302
  %335 = vst [vmem:[%s3 + $0x20] sm:$0xf] %v303
  %336 = vst [vmem:[%s3 + $0x24] sm:$0xf] %v304
  %337 = vst [vmem:[%s3 + $0x28] sm:$0xf] %v305
  %338 = vst [vmem:[%s3 + $0x2c] sm:$0xf] %v306
  %339 = vst [vmem:[%s3 + $0x30] sm:$0xf] %v307
  %340 = vst [vmem:[%s3 + $0x34] sm:$0xf] %v308
  %341 = vst [vmem:[%s3 + $0x38] sm:$0xf] %v309
  %342 = vst [vmem:[%s3 + $0x3c] sm:$0xf] %v310
  // Predicated region
  $region14: #{encoder_forward.2} parent=0 // pred_check
    _
  $region15: #{encoder_forward.2} parent=0 // pred_check_branch
    %344 = sbr.rel (0) target = $region17
  $region16: #{encoder_forward.2} parent=0 // pred_region
    _
  $region17: #{encoder_forward.2} parent=0 // pred_fallthru
    _
  // Predicated region
  $region18: #{encoder_forward.2} parent=0 // pred_check
    _
  $region19: #{encoder_forward.2} parent=0 // pred_check_branch
    %346 = sbr.rel (0) target = $region21
  $region20: #{encoder_forward.2} parent=0 // pred_region
    _
  $region21: #{encoder_forward.2} parent=0 // pred_fallthru
    _

// kernel: encoder_forward.3
$region0: #{encoder_forward.3}
  #allocation0 [shape = 'u32[]', space=smem, size = 0x4, offset = 0x4, fixed_abs, tag = 'smem constant byte address 0x4 - core index']
  #allocation1 [shape = 'u32[144,128]{1,0:T(1,128)}', space=vmem, size = 0x12000, scoped, tag = 'internal scratch']
  %s0 = inlined_call_operand.vmem [shape: bf16[32,512], index: 0, kind: input, shape index: {}]
  %s1 = inlined_call_operand.vmem [shape: bf16[512,128], index: 1, kind: input, shape index: {}]
  %s2 = inlined_call_operand.vmem [shape: f32[1,128], index: 2, kind: input, shape index: {}]
  %s3 = inlined_call_operand.hbm [shape: f32[32,128], index: 3, kind: output, shape index: {}]
  %s4 = sld [smem:[#allocation0]]
  $region22: #{encoder_forward.3} parent=0
    _
  %s6 = ssub.s32 1, %s4
  %s7 = scalar_select 0, %s6, %s4
  $region1: #{encoder_forward.3} parent=0
    #allocation2 [shape = 'u8[16384]{0}', space=vmem, size = 0x4000, scoped, tag = 'output window, operand 0, single buffered']
    #allocation3 [shape = 's32[1]{0}', space=sflag, size = 0x4, scoped, tag = 'scoped memory for encoder_forward.3']
    %8 = vsyncpa [#allocation3], 0
    // Predicated region
    $region2: #{encoder_forward.3} parent=1 // pred_check
      _
    $region3: #{encoder_forward.3} parent=1 // pred_check_branch
      %10 = sbr.rel (0) target = $region5
    $region4: #{encoder_forward.3} parent=1 // pred_region
      _
    $region5: #{encoder_forward.3} parent=1 // pred_fallthru
      _
    // Predicated region
    $region6: #{encoder_forward.3} parent=1 // pred_check
      _
    $region7: #{encoder_forward.3} parent=1 // pred_check_branch
      %12 = sbr.rel (0) target = $region9
    $region8: #{encoder_forward.3} parent=1 // pred_region
      _
    $region9: #{encoder_forward.3} parent=1 // pred_fallthru
      _
    // Predicated region
    $region10: #{encoder_forward.3} parent=1 // pred_check
      _
    $region11: #{encoder_forward.3} parent=1 // pred_check_branch
      %14 = sbr.rel (0) target = $region13
    $region12: #{encoder_forward.3} parent=1 // pred_region
      _
    $region13: #{encoder_forward.3} parent=1 // pred_fallthru
      _
    %v16 = vld [vmem:[%s0] sm:$0xff]
    %v17 = vld [vmem:[%s0 + $0x8] sm:$0xff]
    %v18 = vld [vmem:[%s0 + $0x10] sm:$0xff]
    %v19 = vld [vmem:[%s0 + $0x18] sm:$0xff]
    %v20 = vld [vmem:[%s0 + $0x20] sm:$0xff]
    %v21 = vld [vmem:[%s0 + $0x28] sm:$0xff]
    %v22 = vld [vmem:[%s0 + $0x30] sm:$0xff]
    %v23 = vld [vmem:[%s0 + $0x38] sm:$0xff]
    %v24 = vld [vmem:[%s1] sm:$0xf]
    %v25 = vld [vmem:[%s1 + $0x4] sm:$0xf]
    %v26 = vld [vmem:[%s1 + $0x8] sm:$0xf]
    %v27 = vld [vmem:[%s1 + $0xc] sm:$0xf]
    %v28 = vld [vmem:[%s1 + $0x10] sm:$0xf]
    %v29 = vld [vmem:[%s1 + $0x14] sm:$0xf]
    %v30 = vld [vmem:[%s1 + $0x18] sm:$0xf]
    %v31 = vld [vmem:[%s1 + $0x1c] sm:$0xf]
    %v32 = vld [vmem:[%s1 + $0x20] sm:$0xf]
    %v33 = vld [vmem:[%s1 + $0x24] sm:$0xf]
    %v34 = vld [vmem:[%s1 + $0x28] sm:$0xf]
    %v35 = vld [vmem:[%s1 + $0x2c] sm:$0xf]
    %v36 = vld [vmem:[%s1 + $0x30] sm:$0xf]
    %v37 = vld [vmem:[%s1 + $0x34] sm:$0xf]
    %v38 = vld [vmem:[%s1 + $0x38] sm:$0xf]
    %v39 = vld [vmem:[%s1 + $0x3c] sm:$0xf]
    %v40 = vld [vmem:[%s1 + $0x40] sm:$0xf]
    %v41 = vld [vmem:[%s1 + $0x44] sm:$0xf]
    %v42 = vld [vmem:[%s1 + $0x48] sm:$0xf]
    %v43 = vld [vmem:[%s1 + $0x4c] sm:$0xf]
    %v44 = vld [vmem:[%s1 + $0x50] sm:$0xf]
    %v45 = vld [vmem:[%s1 + $0x54] sm:$0xf]
    %v46 = vld [vmem:[%s1 + $0x58] sm:$0xf]
    %v47 = vld [vmem:[%s1 + $0x5c] sm:$0xf]
    %v48 = vld [vmem:[%s1 + $0x60] sm:$0xf]
    %v49 = vld [vmem:[%s1 + $0x64] sm:$0xf]
    %v50 = vld [vmem:[%s1 + $0x68] sm:$0xf]
    %v51 = vld [vmem:[%s1 + $0x6c] sm:$0xf]
    %v52 = vld [vmem:[%s1 + $0x70] sm:$0xf]
    %v53 = vld [vmem:[%s1 + $0x74] sm:$0xf]
    %v54 = vld [vmem:[%s1 + $0x78] sm:$0xf]
    %v55 = vld [vmem:[%s1 + $0x7c] sm:$0xf]
    %v56 = vld [vmem:[%s1 + $0x80] sm:$0xf]
    %v57 = vld [vmem:[%s1 + $0x84] sm:$0xf]
    %v58 = vld [vmem:[%s1 + $0x88] sm:$0xf]
    %v59 = vld [vmem:[%s1 + $0x8c] sm:$0xf]
    %v60 = vld [vmem:[%s1 + $0x90] sm:$0xf]
    %v61 = vld [vmem:[%s1 + $0x94] sm:$0xf]
    %v62 = vld [vmem:[%s1 + $0x98] sm:$0xf]
    %v63 = vld [vmem:[%s1 + $0x9c] sm:$0xf]
    %v64 = vld [vmem:[%s1 + $0xa0] sm:$0xf]
    %v65 = vld [vmem:[%s1 + $0xa4] sm:$0xf]
    %v66 = vld [vmem:[%s1 + $0xa8] sm:$0xf]
    %v67 = vld [vmem:[%s1 + $0xac] sm:$0xf]
    %v68 = vld [vmem:[%s1 + $0xb0] sm:$0xf]
    %v69 = vld [vmem:[%s1 + $0xb4] sm:$0xf]
    %v70 = vld [vmem:[%s1 + $0xb8] sm:$0xf]
    %v71 = vld [vmem:[%s1 + $0xbc] sm:$0xf]
    %v72 = vld [vmem:[%s1 + $0xc0] sm:$0xf]
    %v73 = vld [vmem:[%s1 + $0xc4] sm:$0xf]
    %v74 = vld [vmem:[%s1 + $0xc8] sm:$0xf]
    %v75 = vld [vmem:[%s1 + $0xcc] sm:$0xf]
    %v76 = vld [vmem:[%s1 + $0xd0] sm:$0xf]
    %v77 = vld [vmem:[%s1 + $0xd4] sm:$0xf]
    %v78 = vld [vmem:[%s1 + $0xd8] sm:$0xf]
    %v79 = vld [vmem:[%s1 + $0xdc] sm:$0xf]
    %v80 = vld [vmem:[%s1 + $0xe0] sm:$0xf]
    %v81 = vld [vmem:[%s1 + $0xe4] sm:$0xf]
    %v82 = vld [vmem:[%s1 + $0xe8] sm:$0xf]
    %v83 = vld [vmem:[%s1 + $0xec] sm:$0xf]
    %v84 = vld [vmem:[%s1 + $0xf0] sm:$0xf]
    %v85 = vld [vmem:[%s1 + $0xf4] sm:$0xf]
    %v86 = vld [vmem:[%s1 + $0xf8] sm:$0xf]
    %v87 = vld [vmem:[%s1 + $0xfc] sm:$0xf]
    %v88 = vld [vmem:[%s2] sm:$0x1]
    %v90 = vlaneseq
    %v91 = vshrl.u32 %v90, 7
    %v92 = vsub.s32 0, %v91
    %v93 = vrot.slane %v88, %v92
    %v103 = vunpack.c.l.b16 %v16
    %v104 = vunpack.c.h.b16 %v16
    %v105 = vunpack.c.l.b16 %v17
    %v106 = vunpack.c.h.b16 %v17
    %v107 = vunpack.c.l.b16 %v18
    %v108 = vunpack.c.h.b16 %v18
    %v109 = vunpack.c.l.b16 %v19
    %v110 = vunpack.c.h.b16 %v19
    %v111 = vunpack.c.l.b16 %v20
    %v112 = vunpack.c.h.b16 %v20
    %v113 = vunpack.c.l.b16 %v21
    %v114 = vunpack.c.h.b16 %v21
    %v115 = vunpack.c.l.b16 %v22
    %v116 = vunpack.c.h.b16 %v22
    %v117 = vunpack.c.l.b16 %v23
    %v118 = vunpack.c.h.b16 %v23
    %v119 = vpack.c.b16 %v107, %v103
    %v120 = vpack.c.b16 %v108, %v104
    %v121 = vpack.c.b16 %v109, %v105
    %v122 = vpack.c.b16 %v110, %v106
    %v123 = vpack.c.b16 %v115, %v111
    %v124 = vpack.c.b16 %v116, %v112
    %v125 = vpack.c.b16 %v117, %v113
    %v126 = vpack.c.b16 %v118, %v114
    %v199 = vunpack.c.l.b16 %v24
    %v200 = vunpack.c.l.b16 %v25
    %v201 = vunpack.c.l.b16 %v26
    %v202 = vunpack.c.l.b16 %v27
    %v203 = vunpack.c.l.b16 %v28
    %v204 = vunpack.c.l.b16 %v29
    %v205 = vunpack.c.l.b16 %v30
    %v206 = vunpack.c.l.b16 %v31
    %v207 = vunpack.c.l.b16 %v32
    %v208 = vunpack.c.l.b16 %v33
    %v209 = vunpack.c.l.b16 %v34
    %v210 = vunpack.c.l.b16 %v35
    %v211 = vunpack.c.l.b16 %v36
    %v212 = vunpack.c.l.b16 %v37
    %v213 = vunpack.c.l.b16 %v38
    %v214 = vunpack.c.l.b16 %v39
    %v215 = vunpack.c.l.b16 %v40
    %v216 = vunpack.c.l.b16 %v41
    %v217 = vunpack.c.l.b16 %v42
    %v218 = vunpack.c.l.b16 %v43
    %v219 = vunpack.c.l.b16 %v44
    %v220 = vunpack.c.l.b16 %v45
    %v221 = vunpack.c.l.b16 %v46
    %v222 = vunpack.c.l.b16 %v47
    %v223 = vunpack.c.l.b16 %v48
    %v224 = vunpack.c.l.b16 %v49
    %v225 = vunpack.c.l.b16 %v50
    %v226 = vunpack.c.l.b16 %v51
    %v227 = vunpack.c.l.b16 %v52
    %v228 = vunpack.c.l.b16 %v53
    %v229 = vunpack.c.l.b16 %v54
    %v230 = vunpack.c.l.b16 %v55
    %v231 = vunpack.c.l.b16 %v56
    %v232 = vunpack.c.l.b16 %v57
    %v233 = vunpack.c.l.b16 %v58
    %v234 = vunpack.c.l.b16 %v59
    %v235 = vunpack.c.l.b16 %v60
    %v236 = vunpack.c.l.b16 %v61
    %v237 = vunpack.c.l.b16 %v62
    %v238 = vunpack.c.l.b16 %v63
    %v239 = vunpack.c.l.b16 %v64
    %v240 = vunpack.c.l.b16 %v65
    %v241 = vunpack.c.l.b16 %v66
    %v242 = vunpack.c.l.b16 %v67
    %v243 = vunpack.c.l.b16 %v68
    %v244 = vunpack.c.l.b16 %v69
    %v245 = vunpack.c.l.b16 %v70
    %v246 = vunpack.c.l.b16 %v71
    %v247 = vunpack.c.l.b16 %v72
    %v248 = vunpack.c.l.b16 %v73
    %v249 = vunpack.c.l.b16 %v74
    %v250 = vunpack.c.l.b16 %v75
    %v251 = vunpack.c.l.b16 %v76
    %v252 = vunpack.c.l.b16 %v77
    %v253 = vunpack.c.l.b16 %v78
    %v254 = vunpack.c.l.b16 %v79
    %v255 = vunpack.c.l.b16 %v80
    %v256 = vunpack.c.l.b16 %v81
    %v257 = vunpack.c.l.b16 %v82
    %v258 = vunpack.c.l.b16 %v83
    %v259 = vunpack.c.l.b16 %v84
    %v260 = vunpack.c.l.b16 %v85
    %v261 = vunpack.c.l.b16 %v86
    %v262 = vunpack.c.l.b16 %v87
    %v263 = vpack.c.b16 %v200, %v199
    %v264 = vpack.c.b16 %v202, %v201
    %v265 = vpack.c.b16 %v204, %v203
    %v266 = vpack.c.b16 %v206, %v205
    %v267 = vpack.c.b16 %v208, %v207
    %v268 = vpack.c.b16 %v210, %v209
    %v269 = vpack.c.b16 %v212, %v211
    %v270 = vpack.c.b16 %v214, %v213
    %v271 = vpack.c.b16 %v216, %v215
    %v272 = vpack.c.b16 %v218, %v217
    %v273 = vpack.c.b16 %v220, %v219
    %v274 = vpack.c.b16 %v222, %v221
    %v275 = vpack.c.b16 %v224, %v223
    %v276 = vpack.c.b16 %v226, %v225
    %v277 = vpack.c.b16 %v228, %v227
    %v278 = vpack.c.b16 %v230, %v229
    %v279 = vpack.c.b16 %v232, %v231
    %v280 = vpack.c.b16 %v234, %v233
    %v281 = vpack.c.b16 %v236, %v235
    %v282 = vpack.c.b16 %v238, %v237
    %v283 = vpack.c.b16 %v240, %v239
    %v284 = vpack.c.b16 %v242, %v241
    %v285 = vpack.c.b16 %v244, %v243
    %v286 = vpack.c.b16 %v246, %v245
    %v287 = vpack.c.b16 %v248, %v247
    %v288 = vpack.c.b16 %v250, %v249
    %v289 = vpack.c.b16 %v252, %v251
    %v290 = vpack.c.b16 %v254, %v253
    %v291 = vpack.c.b16 %v256, %v255
    %v292 = vpack.c.b16 %v258, %v257
    %v293 = vpack.c.b16 %v260, %v259
    %v294 = vpack.c.b16 %v262, %v261
    %327 = vmatprep.subr.bf16.mxu0 0
    %328 = vmatpush1.bf16.msra.mxu0 %v270
    %329 = vmatprep.subr.bf16.mxu0 0
    %330 = vmatpush1.bf16.msra.mxu0 %v269
    %331 = vmatprep.subr.bf16.mxu0 0
    %332 = vmatpush1.bf16.msra.mxu0 %v268
    %333 = vmatprep.subr.bf16.mxu0 0
    %334 = vmatpush1.bf16.msra.mxu0 %v267
    %335 = vmatprep.subr.bf16.mxu0 0
    %336 = vmatpush1.bf16.msra.mxu0 %v266
    %337 = vmatprep.subr.bf16.mxu0 0
    %338 = vmatpush1.bf16.msra.mxu0 %v265
    %339 = vmatprep.subr.bf16.mxu0 0
    %340 = vmatpush1.bf16.msra.mxu0 %v264
    %341 = vmatprep.subr.bf16.mxu0 0
    %342 = vmatpush1.bf16.msra.mxu0 %v263
    %343 = vmatprep.subr.bf16.mxu0 0
    %344 = vmatpush2.bf16.msra.mxu0 %v278
    %345 = vmatprep.subr.bf16.mxu0 0
    %346 = vmatpush2.bf16.msra.mxu0 %v277
    %347 = vmatprep.subr.bf16.mxu0 0
    %348 = vmatpush2.bf16.msra.mxu0 %v276
    %349 = vmatprep.subr.bf16.mxu0 0
    %350 = vmatpush2.bf16.msra.mxu0 %v275
    %351 = vmatprep.subr.bf16.mxu0 0
    %352 = vmatpush2.bf16.msra.mxu0 %v274
    %353 = vmatprep.subr.bf16.mxu0 0
    %354 = vmatpush2.bf16.msra.mxu0 %v273
    %355 = vmatprep.subr.bf16.mxu0 0
    %356 = vmatpush2.bf16.msra.mxu0 %v272
    %357 = vmatprep.subr.bf16.mxu0 0
    %358 = vmatpush2.bf16.msra.mxu0 %v271
    %359 = vmatprep.mubr.bf16.mxu0 %v120
    %360 = vmatmul.mubr.bf16.gmra.mxu0 %v119
    %v361 = vpop.f32.mrf.mxu0
    %v362 = vadd.f32 %v93, %v361
    %v363 = vpop.f32.mrf.mxu0
    %v364 = vpop.f32.mrf.mxu0
    %v365 = vadd.f32 %v93, %v364
    %v366 = vpop.f32.mrf.mxu0
    %367 = vmatprep.mubr.bf16.mxu0 %v124
    %368 = vmatmul.mubr.bf16.gmra.mxu0 %v123
    %v369 = vpop.f32.mrf.mxu0
    %v370 = vadd.f32 %v93, %v369
    %v371 = vpop.f32.mrf.mxu0
    %v372 = vpop.f32.mrf.mxu0
    %v373 = vadd.f32 %v93, %v372
    %v374 = vpop.f32.mrf.mxu0
    %375 = vdwg.mxu0
    %376 = vmatprep.subr.bf16.mxu0 0
    %377 = vmatpush1.bf16.msra.mxu0 %v286
    %378 = vmatprep.subr.bf16.mxu0 0
    %379 = vmatpush1.bf16.msra.mxu0 %v285
    %380 = vmatprep.subr.bf16.mxu0 0
    %381 = vmatpush1.bf16.msra.mxu0 %v284
    %382 = vmatprep.subr.bf16.mxu0 0
    %383 = vmatpush1.bf16.msra.mxu0 %v283
    %384 = vmatprep.subr.bf16.mxu0 0
    %385 = vmatpush1.bf16.msra.mxu0 %v282
    %386 = vmatprep.subr.bf16.mxu0 0
    %387 = vmatpush1.bf16.msra.mxu0 %v281
    %388 = vmatprep.subr.bf16.mxu0 0
    %389 = vmatpush1.bf16.msra.mxu0 %v280
    %390 = vmatprep.subr.bf16.mxu0 0
    %391 = vmatpush1.bf16.msra.mxu0 %v279
    %392 = vmatprep.subr.bf16.mxu0 0
    %393 = vmatpush2.bf16.msra.mxu0 %v294
    %394 = vmatprep.subr.bf16.mxu0 0
    %395 = vmatpush2.bf16.msra.mxu0 %v293
    %396 = vmatprep.subr.bf16.mxu0 0
    %397 = vmatpush2.bf16.msra.mxu0 %v292
    %398 = vmatprep.subr.bf16.mxu0 0
    %399 = vmatpush2.bf16.msra.mxu0 %v291
    %400 = vmatprep.subr.bf16.mxu0 0
    %401 = vmatpush2.bf16.msra.mxu0 %v290
    %402 = vmatprep.subr.bf16.mxu0 0
    %403 = vmatpush2.bf16.msra.mxu0 %v289
    %404 = vmatprep.subr.bf16.mxu0 0
    %405 = vmatpush2.bf16.msra.mxu0 %v288
    %406 = vmatprep.subr.bf16.mxu0 0
    %407 = vmatpush2.bf16.msra.mxu0 %v287
    %408 = vmatprep.mubr.bf16.mxu0 %v122
    %409 = vmatmul.mubr.bf16.gmra.mxu0 %v121
    %v410 = vpop.f32.mrf.mxu0
    %v411 = vadd.f32 %v362, %v410
    %v412 = vpop.f32.mrf.mxu0
    %v413 = vpop.f32.mrf.mxu0
    %v414 = vadd.f32 %v365, %v413
    %v415 = vpop.f32.mrf.mxu0
    %416 = vmatprep.mubr.bf16.mxu0 %v126
    %417 = vmatmul.mubr.bf16.gmra.mxu0 %v125
    %v418 = vpop.f32.mrf.mxu0
    %v419 = vadd.f32 %v370, %v418
    %v420 = vpop.f32.mrf.mxu0
    %v421 = vpop.f32.mrf.mxu0
    %v422 = vadd.f32 %v373, %v421
    %v423 = vpop.f32.mrf.mxu0
    %424 = vdwg.mxu0
    %425 = vst [vmem:[#allocation2] sm:$0xff] %v411
    %426 = vst [vmem:[#allocation2 + $0x8] sm:$0xff] %v414
    %427 = vst [vmem:[#allocation2 + $0x10] sm:$0xff] %v419
    %428 = vst [vmem:[#allocation2 + $0x18] sm:$0xff] %v422
    // Predicated region
    $region14: #{encoder_forward.3} parent=1 // pred_check
      _
    $region15: #{encoder_forward.3} parent=1 // pred_check_branch
      %430 = sbr.rel (0) target = $region17
    $region16: #{encoder_forward.3} parent=1 // pred_region
      %s432 = ssub.s32 512, 512
      %433 = vsyncadd [#allocation3], %s432
      %s434 = sshll.u32 [#allocation2], 4
      %s435 = int_to_ptr.vmem [resolvable:$true] %s434
      %440 = dma.vmem_to_hbm [thread:$0]  %s435, 512, %s3, [#allocation3], 128, 128, 8
    $region17: #{encoder_forward.3} parent=1 // pred_fallthru
      _
    // Predicated region
    $region18: #{encoder_forward.3} parent=1 // pred_check
      _
    $region19: #{encoder_forward.3} parent=1 // pred_check_branch
      %442 = sbr.rel (0) target = $region21
    $region20: #{encoder_forward.3} parent=1 // pred_region
      %443 = dma.done [#allocation3], 512
    $region21: #{encoder_forward.3} parent=1 // pred_fallthru
      _
    %444 = vsyncpa [#allocation3], 1

</llo_original>
